<compile_context>
chip_gen: v6e
topology: v6e:2x2x1
jax: 0.10.0
libtpu: 0.0.40
codegen_flags: <defaults>
</compile_context>

<pallas_src>
import math
import functools

import jax
import jax.numpy as jnp
from jax.experimental import pallas as pl
from jax.experimental.pallas import tpu as pltpu


def _round_up(a, m):
    return (a + m - 1) // m * m


# ---------------------------------------------------------------------------
# Kernel
# ---------------------------------------------------------------------------
def gru_cell_kernel(x_ref, h_ref, wih_ref, whh_ref, bgi_ref, bhn_ref, out_ref):
    """One batch-tile of a GRUCell step.

    Shapes (per grid step):
      x_ref   : (TB, D)        original dtype
      h_ref   : (TB, Hp)       original dtype, lane-padded hidden state
      wih_ref : (D, 3*Hp)      bf16, per-gate column-padded, pre-transposed
      whh_ref : (Hp, 3*Hp)     bf16
      bgi_ref : (1, 3*Hp)      f32, (b_ir+b_hr, b_iz+b_hz, b_in)
      bhn_ref : (1, Hp)        f32, b_hn
      out_ref : (TB, Hp)
    """
    Hp = out_ref.shape[-1]

    x = x_ref[...]
    h = h_ref[...]

    # bf16 MXU matmuls with f32 accumulation (weights are already bf16).
    xb = x.astype(jnp.bfloat16)
    hb = h.astype(jnp.bfloat16)
    gi = jnp.dot(xb, wih_ref[...], preferred_element_type=jnp.float32) + bgi_ref[...]
    gh = jnp.dot(hb, whh_ref[...], preferred_element_type=jnp.float32)

    # Gate slices fall on 128-lane boundaries (Hp is a multiple of 128).
    i_r, i_z, i_n = gi[:, 0:Hp], gi[:, Hp:2 * Hp], gi[:, 2 * Hp:3 * Hp]
    h_r, h_z, h_n = gh[:, 0:Hp], gh[:, Hp:2 * Hp], gh[:, 2 * Hp:3 * Hp]

    # Elementwise path stays f32 (VPU/EUP-friendly on all chips, incl. v5e).
    r = jax.nn.sigmoid(i_r + h_r)
    z = jax.nn.sigmoid(i_z + h_z)
    n = jnp.tanh(i_n + r * (h_n + bhn_ref[...]))

    h_f32 = h.astype(jnp.float32)
    new_h = n + z * (h_f32 - n)          # == (1 - z) * n + z * h
    out_ref[...] = new_h.astype(out_ref.dtype)


# ---------------------------------------------------------------------------
# Parameter packing (done ONCE, not per call)
# ---------------------------------------------------------------------------
def pack_gru_params(params, compute_dtype=jnp.bfloat16):
    """Convert torch-convention GRUCell params to the kernel layout.

    torch layout:  weight_ih (3H, D), weight_hh (3H, H), bias_* (3H,)
    kernel layout: wih (D, 3*Hp) bf16, whh (Hp, 3*Hp) bf16,
                   bgi (1, 3*Hp) f32 = (b_ir+b_hr, b_iz+b_hz, b_in),
                   bhn (1, Hp)   f32 = b_hn,
    with each gate's H columns zero-padded up to Hp = round_up(H, 128).
    """
    w_ih = params["weight_ih"]
    w_hh = params["weight_hh"]
    H = w_hh.shape[1]
    D = w_ih.shape[1]
    Hp = _round_up(H, 128)

    def pad_weight(w_t, rows, rows_pad):
        # w_t: (rows, 3H) -> (rows_pad, 3*Hp), padding each gate block separately.
        gates = jnp.split(w_t, 3, axis=1)
        gates = [jnp.pad(g, ((0, rows_pad - rows), (0, Hp - H))) for g in gates]
        return jnp.concatenate(gates, axis=1).astype(compute_dtype)

    b_ih = params["bias_ih"].astype(jnp.float32)
    b_hh = params["bias_hh"].astype(jnp.float32)
    b_ir, b_iz, b_in = jnp.split(b_ih, 3)
    b_hr, b_hz, b_hn = jnp.split(b_hh, 3)

    def pad_vec(v):
        return jnp.pad(v, (0, Hp - H))

    bgi = jnp.concatenate(
        [pad_vec(b_ir + b_hr), pad_vec(b_iz + b_hz), pad_vec(b_in)]
    ).reshape(1, 3 * Hp)
    bhn = pad_vec(b_hn).reshape(1, Hp)

    return {
        "wih": pad_weight(w_ih.T, D, D),     # (D, 3*Hp)  bf16
        "whh": pad_weight(w_hh.T, H, Hp),    # (Hp, 3*Hp) bf16
        "bgi": bgi,                          # (1, 3*Hp)  f32
        "bhn": bhn,                          # (1, Hp)    f32
    }


# ---------------------------------------------------------------------------
# Forward wrapper
# ---------------------------------------------------------------------------
@functools.partial(jax.jit, static_argnames=("max_batch_tile",))
def memory_updater_forward(agg_message, prev_memory, packed, max_batch_tile=256):
    """MemoryUpdater(update_type='gru').forward(agg_message, prev_memory)."""
    B, D = agg_message.shape
    _, H = prev_memory.shape
    Hp3 = packed["wih"].shape[1]
    Hp = Hp3 // 3

    # Choose a batch tile and pad B so the grid divides evenly.
    b_pad = _round_up(B, 8)
    if b_pad <= max_batch_tile:
        tb = b_pad
    else:
        tb = max_batch_tile
        b_pad = _round_up(b_pad, tb)
    num_tiles = b_pad // tb

    x = jnp.pad(agg_message, ((0, b_pad - B), (0, 0)))
    h = jnp.pad(prev_memory, ((0, b_pad - B), (0, Hp - H)))

    out = pl.pallas_call(
        gru_cell_kernel,
        out_shape=jax.ShapeDtypeStruct((b_pad, Hp), prev_memory.dtype),
        grid=(num_tiles,),
        in_specs=[
            pl.BlockSpec((tb, D), lambda i: (i, 0)),        # x tile
            pl.BlockSpec((tb, Hp), lambda i: (i, 0)),       # h tile
            pl.BlockSpec((D, Hp3), lambda i: (0, 0)),       # wih (VMEM-resident)
            pl.BlockSpec((Hp, Hp3), lambda i: (0, 0)),      # whh (VMEM-resident)
            pl.BlockSpec((1, Hp3), lambda i: (0, 0)),       # bgi (VMEM-resident)
            pl.BlockSpec((1, Hp), lambda i: (0, 0)),        # bhn (VMEM-resident)
        ],
        out_specs=pl.BlockSpec((tb, Hp), lambda i: (i, 0)),
        compiler_params=pltpu.CompilerParams(
            dimension_semantics=("parallel",)),
    )(x, h, packed["wih"], packed["whh"], packed["bgi"], packed["bhn"])

    return out[:B, :H]


# ---------------------------------------------------------------------------
# Init + references
# ---------------------------------------------------------------------------
def init_gru_params(key, memory_dim, message_dim, dtype=jnp.float32):
    """torch.nn.GRUCell-shaped params, U(-1/sqrt(H), 1/sqrt(H))."""
    k = 1.0 / math.sqrt(memory_dim)
    k1, k2, k3, k4 = jax.random.split(key, 4)
    return {
        "weight_ih": jax.random.uniform(k1, (3 * memory_dim, message_dim), dtype, -k, k),
        "weight_hh": jax.random.uniform(k2, (3 * memory_dim, memory_dim), dtype, -k, k),
        "bias_ih": jax.random.uniform(k3, (3 * memory_dim,), dtype, -k, k),
        "bias_hh": jax.random.uniform(k4, (3 * memory_dim,), dtype, -k, k),
    }


def _reference_gru(agg_message, prev_memory, params, quantize_bf16=False):
    """Pure-JAX torch.nn.GRUCell reference.

    With quantize_bf16=True it mirrors the kernel's bf16 matmul inputs
    (f32 accumulation, f32 activations) for a tight numerical match.
    """
    w_ih = params["weight_ih"].astype(jnp.float32)
    w_hh = params["weight_hh"].astype(jnp.float32)
    x = agg_message.astype(jnp.float32)
    h = prev_memory.astype(jnp.float32)
    if quantize_bf16:
        w_ih = w_ih.astype(jnp.bfloat16).astype(jnp.float32)
        w_hh = w_hh.astype(jnp.bfloat16).astype(jnp.float32)
        x = x.astype(jnp.bfloat16).astype(jnp.float32)
        h_mm = h.astype(jnp.bfloat16).astype(jnp.float32)
    else:
        h_mm = h
    gi = x @ w_ih.T + params["bias_ih"].astype(jnp.float32)
    gh = h_mm @ w_hh.T + params["bias_hh"].astype(jnp.float32)
    H = prev_memory.shape[-1]
    i_r, i_z, i_n = gi[:, :H], gi[:, H:2 * H], gi[:, 2 * H:]
    h_r, h_z, h_n = gh[:, :H], gh[:, H:2 * H], gh[:, 2 * H:]
    r = jax.nn.sigmoid(i_r + h_r)
    z = jax.nn.sigmoid(i_z + h_z)
    n = jnp.tanh(i_n + r * h_n)
    return (1.0 - z) * n + z * h


if __name__ == "__main__":
    batch = 8
    message_dim = 32
    memory_dim = 32

    key = jax.random.PRNGKey(0)
    k_params, k_msg, k_mem = jax.random.split(key, 3)

    params = init_gru_params(k_params, memory_dim, message_dim)
    packed = pack_gru_params(params)                       # done once, not per call
    agg_message = jax.random.normal(k_msg, (batch, message_dim), jnp.float32)
    prev_memory = jax.random.normal(k_mem, (batch, memory_dim), jnp.float32)

    new_memory = memory_updater_forward(agg_message, prev_memory, packed)
    new_memory = jax.block_until_ready(new_memory)
    assert new_memory.shape == (batch, memory_dim)

    # Tight check against a bf16-matched reference (same quantization as kernel).
    ref_bf16 = _reference_gru(agg_message, prev_memory, params, quantize_bf16=True)
    assert jnp.allclose(new_memory, ref_bf16, atol=1e-4, rtol=1e-4), (
        jnp.max(jnp.abs(new_memory - ref_bf16)))

    # Loose sanity check against the full-f32 torch.nn.GRUCell reference.
    ref_f32 = _reference_gru(agg_message, prev_memory, params, quantize_bf16=False)
    assert jnp.allclose(new_memory, ref_f32, atol=5e-2, rtol=5e-2), (
        jnp.max(jnp.abs(new_memory - ref_f32)))

    print("KERNEL_OK")
</pallas_src>

<mosaic_0001>
module attributes {stable_mosaic.version = 11 : i64} {
  func.func @gru_cell_kernel(%arg0: i32, %arg1: memref<8x32xf32, #tpu.memory_space<vmem>>, %arg2: memref<8x128xf32, #tpu.memory_space<vmem>>, %arg3: memref<32x384xbf16, #tpu.memory_space<vmem>>, %arg4: memref<128x384xbf16, #tpu.memory_space<vmem>>, %arg5: memref<1x384xf32, #tpu.memory_space<vmem>>, %arg6: memref<1x128xf32, #tpu.memory_space<vmem>>, %arg7: memref<8x128xf32, #tpu.memory_space<vmem>>) attributes {dimension_semantics = [#tpu.dimension_semantics<parallel>], iteration_bounds = array<i64: 1>, scalar_prefetch = 0 : i64, scratch_operands = 0 : i64, tpu.core_type = #tpu.core_type<tc>, window_params = [{transform_indices = @transform_0, window_bounds = array<i64: 8, 32>}, {transform_indices = @transform_1, window_bounds = array<i64: 8, 128>}, {pipeline_mode = #tpu.pipeline_mode<synchronous>, transform_indices = @transform_2, window_bounds = array<i64: 32, 384>}, {pipeline_mode = #tpu.pipeline_mode<synchronous>, transform_indices = @transform_3, window_bounds = array<i64: 128, 384>}, {pipeline_mode = #tpu.pipeline_mode<synchronous>, transform_indices = @transform_4, window_bounds = array<i64: 1, 384>}, {pipeline_mode = #tpu.pipeline_mode<synchronous>, transform_indices = @transform_5, window_bounds = array<i64: 1, 128>}, {transform_indices = @transform_6, window_bounds = array<i64: 8, 128>}]} {
    %c0 = arith.constant 0 : index
    %c0_0 = arith.constant 0 : index
    %0 = vector.load %arg1[%c0, %c0_0] : memref<8x32xf32, #tpu.memory_space<vmem>>, vector<8x32xf32>
    %c0_1 = arith.constant 0 : index
    %c0_2 = arith.constant 0 : index
    %1 = vector.load %arg2[%c0_1, %c0_2] : memref<8x128xf32, #tpu.memory_space<vmem>>, vector<8x128xf32>
    %2 = arith.truncf %0 : vector<8x32xf32> to vector<8x32xbf16>
    %3 = arith.truncf %1 : vector<8x128xf32> to vector<8x128xbf16>
    %c0_3 = arith.constant 0 : index
    %c0_4 = arith.constant 0 : index
    %4 = vector.load %arg3[%c0_3, %c0_4] : memref<32x384xbf16, #tpu.memory_space<vmem>>, vector<32x384xbf16>
    %cst = arith.constant dense<0.000000e+00> : vector<8x384xf32>
    %5 = tpu.matmul %2, %4, %cst {dimension_numbers = #tpu.dot_dimension_numbers<[1], [0], [0], [1], [0, 0, 1, 1], [], []>} : vector<8x32xbf16>, vector<32x384xbf16>, vector<8x384xf32> -> vector<8x384xf32>
    %c0_5 = arith.constant 0 : index
    %c0_6 = arith.constant 0 : index
    %6 = vector.load %arg5[%c0_5, %c0_6] : memref<1x384xf32, #tpu.memory_space<vmem>>, vector<1x384xf32>
    %7 = vector.broadcast %6 : vector<1x384xf32> to vector<8x384xf32>
    %8 = arith.addf %5, %7 : vector<8x384xf32>
    %c0_7 = arith.constant 0 : index
    %c0_8 = arith.constant 0 : index
    %9 = vector.load %arg4[%c0_7, %c0_8] : memref<128x384xbf16, #tpu.memory_space<vmem>>, vector<128x384xbf16>
    %cst_9 = arith.constant dense<0.000000e+00> : vector<8x384xf32>
    %10 = tpu.matmul %3, %9, %cst_9 {dimension_numbers = #tpu.dot_dimension_numbers<[1], [0], [0], [1], [0, 0, 1, 1], [], []>} : vector<8x128xbf16>, vector<128x384xbf16>, vector<8x384xf32> -> vector<8x384xf32>
    %11 = vector.extract_strided_slice %8 {offsets = [0, 0], sizes = [8, 128], strides = [1, 1]} : vector<8x384xf32> to vector<8x128xf32>
    %12 = vector.extract_strided_slice %8 {offsets = [0, 128], sizes = [8, 128], strides = [1, 1]} : vector<8x384xf32> to vector<8x128xf32>
    %13 = vector.extract_strided_slice %8 {offsets = [0, 256], sizes = [8, 128], strides = [1, 1]} : vector<8x384xf32> to vector<8x128xf32>
    %14 = vector.extract_strided_slice %10 {offsets = [0, 0], sizes = [8, 128], strides = [1, 1]} : vector<8x384xf32> to vector<8x128xf32>
    %15 = vector.extract_strided_slice %10 {offsets = [0, 128], sizes = [8, 128], strides = [1, 1]} : vector<8x384xf32> to vector<8x128xf32>
    %16 = vector.extract_strided_slice %10 {offsets = [0, 256], sizes = [8, 128], strides = [1, 1]} : vector<8x384xf32> to vector<8x128xf32>
    %17 = arith.addf %11, %14 : vector<8x128xf32>
    %18 = arith.negf %17 : vector<8x128xf32>
    %19 = math.exp %18 : vector<8x128xf32>
    %cst_10 = arith.constant 1.000000e+00 : f32
    %20 = vector.broadcast %cst_10 : f32 to vector<8x128xf32>
    %21 = arith.addf %20, %19 : vector<8x128xf32>
    %22 = arith.divf %20, %21 : vector<8x128xf32>
    %23 = arith.addf %12, %15 : vector<8x128xf32>
    %24 = arith.negf %23 : vector<8x128xf32>
    %25 = math.exp %24 : vector<8x128xf32>
    %cst_11 = arith.constant 1.000000e+00 : f32
    %26 = vector.broadcast %cst_11 : f32 to vector<8x128xf32>
    %27 = arith.addf %26, %25 : vector<8x128xf32>
    %28 = arith.divf %26, %27 : vector<8x128xf32>
    %c0_12 = arith.constant 0 : index
    %c0_13 = arith.constant 0 : index
    %29 = vector.load %arg6[%c0_12, %c0_13] : memref<1x128xf32, #tpu.memory_space<vmem>>, vector<1x128xf32>
    %30 = vector.broadcast %29 : vector<1x128xf32> to vector<8x128xf32>
    %31 = arith.addf %16, %30 : vector<8x128xf32>
    %32 = arith.mulf %22, %31 : vector<8x128xf32>
    %33 = arith.addf %13, %32 : vector<8x128xf32>
    %34 = math.tanh %33 : vector<8x128xf32>
    %35 = arith.subf %1, %34 : vector<8x128xf32>
    %36 = arith.mulf %28, %35 : vector<8x128xf32>
    %37 = arith.addf %34, %36 : vector<8x128xf32>
    %c0_14 = arith.constant 0 : index
    %c0_15 = arith.constant 0 : index
    %38 = vector.load %arg7[%c0_14, %c0_15] : memref<8x128xf32, #tpu.memory_space<vmem>>, vector<8x128xf32>
    tpu.vector_store %arg7[%c0_14, %c0_15], %37 {strides = array<i32>} : memref<8x128xf32, #tpu.memory_space<vmem>>, vector<8x128xf32>,
    return
  }
  func.func @transform_0(%arg0: i32) -> (i32, i32) {
    %c0_i32 = arith.constant 0 : i32
    %c0_i32_0 = arith.constant 0 : i32
    return %arg0, %c0_i32 : i32, i32
  }
  func.func @transform_1(%arg0: i32) -> (i32, i32) {
    %c0_i32 = arith.constant 0 : i32
    %c0_i32_0 = arith.constant 0 : i32
    return %arg0, %c0_i32 : i32, i32
  }
  func.func @transform_2(%arg0: i32) -> (i32, i32) {
    %c0_i32 = arith.constant 0 : i32
    %c0_i32_0 = arith.constant 0 : i32
    %c0_i32_1 = arith.constant 0 : i32
    return %c0_i32, %c0_i32_0 : i32, i32
  }
  func.func @transform_3(%arg0: i32) -> (i32, i32) {
    %c0_i32 = arith.constant 0 : i32
    %c0_i32_0 = arith.constant 0 : i32
    %c0_i32_1 = arith.constant 0 : i32
    return %c0_i32, %c0_i32_0 : i32, i32
  }
  func.func @transform_4(%arg0: i32) -> (i32, i32) {
    %c0_i32 = arith.constant 0 : i32
    %c0_i32_0 = arith.constant 0 : i32
    %c0_i32_1 = arith.constant 0 : i32
    return %c0_i32, %c0_i32_0 : i32, i32
  }
  func.func @transform_5(%arg0: i32) -> (i32, i32) {
    %c0_i32 = arith.constant 0 : i32
    %c0_i32_0 = arith.constant 0 : i32
    %c0_i32_1 = arith.constant 0 : i32
    return %c0_i32, %c0_i32_0 : i32, i32
  }
  func.func @transform_6(%arg0: i32) -> (i32, i32) {
    %c0_i32 = arith.constant 0 : i32
    %c0_i32_0 = arith.constant 0 : i32
    return %arg0, %c0_i32 : i32, i32
  }
}

</mosaic_0001>

<llo_original>
// kernel: memory_updater_forward.1
$region0: #{memory_updater_forward.1}
  #allocation0 [shape = 'u32[]', space=smem, size = 0x4, offset = 0x4, fixed_abs, tag = 'smem constant byte address 0x4 - core index']
  #allocation1 [shape = 'u32[144,128]{1,0:T(1,128)}', space=vmem, size = 0x12000, scoped, tag = 'internal scratch']
  %s0 = inlined_call_operand.vmem [shape: f32[8,32], index: 0, kind: input, shape index: {}]
  %s1 = inlined_call_operand.vmem [shape: f32[8,128], index: 1, kind: input, shape index: {}]
  %s2 = inlined_call_operand.hbm [shape: bf16[32,384], index: 2, kind: input, shape index: {}]
  %s3 = inlined_call_operand.hbm [shape: bf16[128,384], index: 3, kind: input, shape index: {}]
  %s4 = inlined_call_operand.vmem [shape: f32[1,384], index: 4, kind: input, shape index: {}]
  %s5 = inlined_call_operand.vmem [shape: f32[1,128], index: 5, kind: input, shape index: {}]
  %s6 = inlined_call_operand.hbm [shape: f32[8,128], index: 6, kind: output, shape index: {}]
  %s7 = sld [smem:[#allocation0]]
  $region42: #{memory_updater_forward.1} parent=0
    _
  %s9 = ssub.s32 1, %s7
  %s10 = scalar_select 0, %s9, %s7
  $region1: #{memory_updater_forward.1} parent=0
    #allocation2 [shape = 'u8[24576]{0}', space=vmem, size = 0x6000, scoped, tag = 'input window, operand 2, single buffered']
    #allocation3 [shape = 's32[1]{0}', space=sflag, size = 0x4, scoped, tag = 'scoped memory for memory_updater_forward.1']
    #allocation4 [shape = 's32[1]{0}', space=sflag, size = 0x4, scoped, tag = 'scoped memory for memory_updater_forward.1']
    #allocation5 [shape = 'u8[98304]{0}', space=vmem, size = 0x18000, scoped, tag = 'input window, operand 3, single buffered']
    #allocation6 [shape = 's32[1]{0}', space=sflag, size = 0x4, scoped, tag = 'scoped memory for memory_updater_forward.1']
    #allocation7 [shape = 'u8[4096]{0}', space=vmem, size = 0x1000, scoped, tag = 'output window, operand 0, single buffered']
    %11 = vsyncpa [#allocation3], 0
    %12 = vsyncpa [#allocation6], 0
    %13 = vsyncpa [#allocation4], 0
    // Predicated region
    $region2: #{memory_updater_forward.1} parent=1 // pred_check
      _
    $region3: #{memory_updater_forward.1} parent=1 // pred_check_branch
      %15 = sbr.rel (0) target = $region5
    $region4: #{memory_updater_forward.1} parent=1 // pred_region
      _
    $region5: #{memory_updater_forward.1} parent=1 // pred_fallthru
      _
    // Predicated region
    $region6: #{memory_updater_forward.1} parent=1 // pred_check
      _
    $region7: #{memory_updater_forward.1} parent=1 // pred_check_branch
      %17 = sbr.rel (0) target = $region9
    $region8: #{memory_updater_forward.1} parent=1 // pred_region
      _
    $region9: #{memory_updater_forward.1} parent=1 // pred_fallthru
      _
    // Predicated region
    $region10: #{memory_updater_forward.1} parent=1 // pred_check
      _
    $region11: #{memory_updater_forward.1} parent=1 // pred_check_branch
      %19 = sbr.rel (0) target = $region13
    $region12: #{memory_updater_forward.1} parent=1 // pred_region
      %s21 = ssub.s32 768, 768
      %22 = vsyncadd [#allocation3], %s21
      %s23 = sshll.u32 [#allocation2], 4
      %s24 = int_to_ptr.vmem [resolvable:$true] %s23
      %29 = dma.hbm_to_vmem [thread:$0]  %s2, 768, %s24, [#allocation3], 192, 192, 12
    $region13: #{memory_updater_forward.1} parent=1 // pred_fallthru
      _
    // Predicated region
    $region14: #{memory_updater_forward.1} parent=1 // pred_check
      _
    $region15: #{memory_updater_forward.1} parent=1 // pred_check_branch
      %31 = sbr.rel (0) target = $region17
    $region16: #{memory_updater_forward.1} parent=1 // pred_region
      %s33 = ssub.s32 3072, 3072
      %34 = vsyncadd [#allocation6], %s33
      %s35 = sshll.u32 [#allocation5], 4
      %s36 = int_to_ptr.vmem [resolvable:$true] %s35
      %41 = dma.hbm_to_vmem [thread:$0]  %s3, 3072, %s36, [#allocation6], 192, 192, 12
    $region17: #{memory_updater_forward.1} parent=1 // pred_fallthru
      _
    // Predicated region
    $region18: #{memory_updater_forward.1} parent=1 // pred_check
      _
    $region19: #{memory_updater_forward.1} parent=1 // pred_check_branch
      %43 = sbr.rel (0) target = $region21
    $region20: #{memory_updater_forward.1} parent=1 // pred_region
      _
    $region21: #{memory_updater_forward.1} parent=1 // pred_fallthru
      _
    // Predicated region
    $region22: #{memory_updater_forward.1} parent=1 // pred_check
      _
    $region23: #{memory_updater_forward.1} parent=1 // pred_check_branch
      %45 = sbr.rel (0) target = $region25
    $region24: #{memory_updater_forward.1} parent=1 // pred_region
      _
    $region25: #{memory_updater_forward.1} parent=1 // pred_fallthru
      _
    // Predicated region
    $region26: #{memory_updater_forward.1} parent=1 // pred_check
      _
    $region27: #{memory_updater_forward.1} parent=1 // pred_check_branch
      %47 = sbr.rel (0) target = $region29
    $region28: #{memory_updater_forward.1} parent=1 // pred_region
      %48 = dma.done [#allocation3], 768
    $region29: #{memory_updater_forward.1} parent=1 // pred_fallthru
      _
    // Predicated region
    $region30: #{memory_updater_forward.1} parent=1 // pred_check
      _
    $region31: #{memory_updater_forward.1} parent=1 // pred_check_branch
      %50 = sbr.rel (0) target = $region33
    $region32: #{memory_updater_forward.1} parent=1 // pred_region
      %51 = dma.done [#allocation6], 3072
    $region33: #{memory_updater_forward.1} parent=1 // pred_fallthru
      _
    %v53 = vld [vmem:[%s0] sm:$0xff]
    %v54 = vld [vmem:[%s1] sm:$0xff]
    %v55 = vpack.c.bf16 %v53, %v53
    %v56 = vpack.c.bf16 %v54, %v54
    %v57 = vld [vmem:[#allocation2] sm:$0xff]
    %v58 = vld [vmem:[#allocation2 + $0x8] sm:$0xf]
    %v59 = vld [vmem:[#allocation2 + $0xc] sm:$0xff]
    %v60 = vld [vmem:[#allocation2 + $0x14] sm:$0xf]
    %v61 = vld [vmem:[#allocation2 + $0x18] sm:$0xff]
    %v62 = vld [vmem:[#allocation2 + $0x20] sm:$0xf]
    %v63 = vld [vmem:[#allocation2 + $0x24] sm:$0xff]
    %v64 = vld [vmem:[#allocation2 + $0x2c] sm:$0xf]
    %v65 = vld [vmem:[%s4] sm:$0x7]
    %v67 = vlaneseq
    %v68 = vshrl.u32 %v67, 7
    %v69 = vsub.s32 0, %v68
    %v70 = vrot.slane %v65, %v69
    %v71 = vlaneseq
    %v72 = vshrl.u32 %v71, 7
    %v73 = vsub.s32 1, %v72
    %v74 = vrot.slane %v65, %v73
    %v75 = vlaneseq
    %v76 = vshrl.u32 %v75, 7
    %v77 = vsub.s32 2, %v76
    %v78 = vrot.slane %v65, %v77
    %v90 = vunpack.c.l.b16 %v57
    %v91 = vunpack.c.h.b16 %v57
    %v92 = vunpack.c.l.b16 %v58
    %v93 = vunpack.c.l.b16 %v59
    %v94 = vunpack.c.h.b16 %v59
    %v95 = vunpack.c.l.b16 %v60
    %v96 = vunpack.c.l.b16 %v61
    %v97 = vunpack.c.h.b16 %v61
    %v98 = vunpack.c.l.b16 %v62
    %v99 = vunpack.c.l.b16 %v63
    %v100 = vunpack.c.h.b16 %v63
    %v101 = vunpack.c.l.b16 %v64
    %v102 = vpack.c.b16 %v93, %v90
    %v103 = vpack.c.b16 %v94, %v91
    %v104 = vpack.c.b16 %v95, %v92
    %v105 = vpack.c.b16 %v99, %v96
    %v106 = vpack.c.b16 %v100, %v97
    %v107 = vpack.c.b16 %v101, %v98
    %vm114 = vcmask 261120
    %v116 = vsel %vm114, %v55, 0
    %118 = vmatprep.subr.bf16.mxu0 0
    %119 = vmatpush1.bf16.msra.mxu0 0
    %120 = vmatprep.subr.bf16.mxu0 0
    %121 = vmatpush1.bf16.msra.mxu0 0
    %122 = vmatprep.subr.bf16.mxu0 0
    %123 = vmatpush1.bf16.msra.mxu0 0
    %124 = vmatprep.subr.bf16.mxu0 0
    %125 = vmatpush1.bf16.msra.mxu0 0
    %126 = vmatprep.subr.bf16.mxu0 0
    %127 = vmatpush1.bf16.msra.mxu0 0
    %128 = vmatprep.subr.bf16.mxu0 0
    %129 = vmatpush1.bf16.msra.mxu0 0
    %130 = vmatprep.subr.bf16.mxu0 %v106
    %131 = vmatpush1.bf16.msra.mxu0 %v105
    %132 = vmatprep.subr.bf16.mxu0 %v103
    %133 = vmatpush1.bf16.msra.mxu0 %v102
    %134 = vmatprep.subr.bf16.mxu0 0
    %135 = vmatpush2.bf16.msra.mxu0 0
    %136 = vmatprep.subr.bf16.mxu0 0
    %137 = vmatpush2.bf16.msra.mxu0 0
    %138 = vmatprep.subr.bf16.mxu0 0
    %139 = vmatpush2.bf16.msra.mxu0 0
    %140 = vmatprep.subr.bf16.mxu0 0
    %141 = vmatpush2.bf16.msra.mxu0 0
    %142 = vmatprep.subr.bf16.mxu0 0
    %143 = vmatpush2.bf16.msra.mxu0 0
    %144 = vmatprep.subr.bf16.mxu0 0
    %145 = vmatpush2.bf16.msra.mxu0 0
    %146 = vmatprep.subr.bf16.mxu0 0
    %147 = vmatpush2.bf16.msra.mxu0 0
    %148 = vmatprep.subr.bf16.mxu0 0
    %149 = vmatpush2.bf16.msra.mxu0 0
    %150 = vmatprep.mubr.bf16.mxu0 0
    %151 = vmatmul.mubr.bf16.gmra.mxu0 %v116
    %v152 = vpop.f32.mrf.mxu0
    %v153 = vadd.f32 %v70, %v152
    %v154 = vpop.f32.mrf.mxu0
    %v155 = vadd.f32 %v74, %v154
    %v156 = vpop.f32.mrf.mxu0
    %v157 = vpop.f32.mrf.mxu0
    %158 = vdwg.mxu0
    %159 = vmatprep.subr.bf16.mxu0 0
    %160 = vmatpush1.bf16.msra.mxu0 0
    %161 = vmatprep.subr.bf16.mxu0 0
    %162 = vmatpush1.bf16.msra.mxu0 0
    %163 = vmatprep.subr.bf16.mxu0 0
    %164 = vmatpush1.bf16.msra.mxu0 0
    %165 = vmatprep.subr.bf16.mxu0 0
    %166 = vmatpush1.bf16.msra.mxu0 0
    %167 = vmatprep.subr.bf16.mxu0 0
    %168 = vmatpush1.bf16.msra.mxu0 0
    %169 = vmatprep.subr.bf16.mxu0 0
    %170 = vmatpush1.bf16.msra.mxu0 0
    %171 = vmatprep.subr.bf16.mxu0 0
    %172 = vmatpush1.bf16.msra.mxu0 %v107
    %173 = vmatprep.subr.bf16.mxu0 0
    %174 = vmatpush1.bf16.msra.mxu0 %v104
    %175 = vmatprep.subr.bf16.mxu0 0
    %176 = vmatpush2.bf16.msra.mxu0 0
    %177 = vmatprep.subr.bf16.mxu0 0
    %178 = vmatpush2.bf16.msra.mxu0 0
    %179 = vmatprep.subr.bf16.mxu0 0
    %180 = vmatpush2.bf16.msra.mxu0 0
    %181 = vmatprep.subr.bf16.mxu0 0
    %182 = vmatpush2.bf16.msra.mxu0 0
    %183 = vmatprep.subr.bf16.mxu0 0
    %184 = vmatpush2.bf16.msra.mxu0 0
    %185 = vmatprep.subr.bf16.mxu0 0
    %186 = vmatpush2.bf16.msra.mxu0 0
    %187 = vmatprep.subr.bf16.mxu0 0
    %188 = vmatpush2.bf16.msra.mxu0 0
    %189 = vmatprep.subr.bf16.mxu0 0
    %190 = vmatpush2.bf16.msra.mxu0 0
    %191 = vmatprep.mubr.bf16.mxu0 0
    %192 = vmatmul.mubr.bf16.gmra.mxu0 %v116
    %v193 = vpop.f32.mrf.mxu0
    %v194 = vadd.f32 %v78, %v193
    %v195 = vpop.f32.mrf.mxu0
    %v196 = vpop.f32.mrf.mxu0
    %v197 = vpop.f32.mrf.mxu0
    %198 = vdwg.mxu0
    %v199 = vld [vmem:[#allocation5] sm:$0xff]
    %v200 = vld [vmem:[#allocation5 + $0x8] sm:$0xf]
    %v201 = vld [vmem:[#allocation5 + $0xc] sm:$0xff]
    %v202 = vld [vmem:[#allocation5 + $0x14] sm:$0xf]
    %v203 = vld [vmem:[#allocation5 + $0x18] sm:$0xff]
    %v204 = vld [vmem:[#allocation5 + $0x20] sm:$0xf]
    %v205 = vld [vmem:[#allocation5 + $0x24] sm:$0xff]
    %v206 = vld [vmem:[#allocation5 + $0x2c] sm:$0xf]
    %v207 = vld [vmem:[#allocation5 + $0x30] sm:$0xff]
    %v208 = vld [vmem:[#allocation5 + $0x38] sm:$0xf]
    %v209 = vld [vmem:[#allocation5 + $0x3c] sm:$0xff]
    %v210 = vld [vmem:[#allocation5 + $0x44] sm:$0xf]
    %v211 = vld [vmem:[#allocation5 + $0x48] sm:$0xff]
    %v212 = vld [vmem:[#allocation5 + $0x50] sm:$0xf]
    %v213 = vld [vmem:[#allocation5 + $0x54] sm:$0xff]
    %v214 = vld [vmem:[#allocation5 + $0x5c] sm:$0xf]
    %v215 = vld [vmem:[#allocation5 + $0x60] sm:$0xff]
    %v216 = vld [vmem:[#allocation5 + $0x68] sm:$0xf]
    %v217 = vld [vmem:[#allocation5 + $0x6c] sm:$0xff]
    %v218 = vld [vmem:[#allocation5 + $0x74] sm:$0xf]
    %v219 = vld [vmem:[#allocation5 + $0x78] sm:$0xff]
    %v220 = vld [vmem:[#allocation5 + $0x80] sm:$0xf]
    %v221 = vld [vmem:[#allocation5 + $0x84] sm:$0xff]
    %v222 = vld [vmem:[#allocation5 + $0x8c] sm:$0xf]
    %v223 = vld [vmem:[#allocation5 + $0x90] sm:$0xff]
    %v224 = vld [vmem:[#allocation5 + $0x98] sm:$0xf]
    %v225 = vld [vmem:[#allocation5 + $0x9c] sm:$0xff]
    %v226 = vld [vmem:[#allocation5 + $0xa4] sm:$0xf]
    %v227 = vld [vmem:[#allocation5 + $0xa8] sm:$0xff]
    %v228 = vld [vmem:[#allocation5 + $0xb0] sm:$0xf]
    %v229 = vld [vmem:[#allocation5 + $0xb4] sm:$0xff]
    %v230 = vld [vmem:[#allocation5 + $0xbc] sm:$0xf]
    %v263 = vunpack.c.l.b16 %v199
    %v264 = vunpack.c.h.b16 %v199
    %v265 = vunpack.c.l.b16 %v200
    %v266 = vunpack.c.l.b16 %v201
    %v267 = vunpack.c.h.b16 %v201
    %v268 = vunpack.c.l.b16 %v202
    %v269 = vunpack.c.l.b16 %v203
    %v270 = vunpack.c.h.b16 %v203
    %v271 = vunpack.c.l.b16 %v204
    %v272 = vunpack.c.l.b16 %v205
    %v273 = vunpack.c.h.b16 %v205
    %v274 = vunpack.c.l.b16 %v206
    %v275 = vunpack.c.l.b16 %v207
    %v276 = vunpack.c.h.b16 %v207
    %v277 = vunpack.c.l.b16 %v208
    %v278 = vunpack.c.l.b16 %v209
    %v279 = vunpack.c.h.b16 %v209
    %v280 = vunpack.c.l.b16 %v210
    %v281 = vunpack.c.l.b16 %v211
    %v282 = vunpack.c.h.b16 %v211
    %v283 = vunpack.c.l.b16 %v212
    %v284 = vunpack.c.l.b16 %v213
    %v285 = vunpack.c.h.b16 %v213
    %v286 = vunpack.c.l.b16 %v214
    %v287 = vunpack.c.l.b16 %v215
    %v288 = vunpack.c.h.b16 %v215
    %v289 = vunpack.c.l.b16 %v216
    %v290 = vunpack.c.l.b16 %v217
    %v291 = vunpack.c.h.b16 %v217
    %v292 = vunpack.c.l.b16 %v218
    %v293 = vunpack.c.l.b16 %v219
    %v294 = vunpack.c.h.b16 %v219
    %v295 = vunpack.c.l.b16 %v220
    %v296 = vunpack.c.l.b16 %v221
    %v297 = vunpack.c.h.b16 %v221
    %v298 = vunpack.c.l.b16 %v222
    %v299 = vunpack.c.l.b16 %v223
    %v300 = vunpack.c.h.b16 %v223
    %v301 = vunpack.c.l.b16 %v224
    %v302 = vunpack.c.l.b16 %v225
    %v303 = vunpack.c.h.b16 %v225
    %v304 = vunpack.c.l.b16 %v226
    %v305 = vunpack.c.l.b16 %v227
    %v306 = vunpack.c.h.b16 %v227
    %v307 = vunpack.c.l.b16 %v228
    %v308 = vunpack.c.l.b16 %v229
    %v309 = vunpack.c.h.b16 %v229
    %v310 = vunpack.c.l.b16 %v230
    %v311 = vpack.c.b16 %v266, %v263
    %v312 = vpack.c.b16 %v267, %v264
    %v313 = vpack.c.b16 %v268, %v265
    %v314 = vpack.c.b16 %v272, %v269
    %v315 = vpack.c.b16 %v273, %v270
    %v316 = vpack.c.b16 %v274, %v271
    %v317 = vpack.c.b16 %v278, %v275
    %v318 = vpack.c.b16 %v279, %v276
    %v319 = vpack.c.b16 %v280, %v277
    %v320 = vpack.c.b16 %v284, %v281
    %v321 = vpack.c.b16 %v285, %v282
    %v322 = vpack.c.b16 %v286, %v283
    %v323 = vpack.c.b16 %v290, %v287
    %v324 = vpack.c.b16 %v291, %v288
    %v325 = vpack.c.b16 %v292, %v289
    %v326 = vpack.c.b16 %v296, %v293
    %v327 = vpack.c.b16 %v297, %v294
    %v328 = vpack.c.b16 %v298, %v295
    %v329 = vpack.c.b16 %v302, %v299
    %v330 = vpack.c.b16 %v303, %v300
    %v331 = vpack.c.b16 %v304, %v301
    %v332 = vpack.c.b16 %v308, %v305
    %v333 = vpack.c.b16 %v309, %v306
    %v334 = vpack.c.b16 %v310, %v307
    %359 = vmatprep.subr.bf16.mxu0 %v333
    %360 = vmatpush1.bf16.msra.mxu0 %v332
    %361 = vmatprep.subr.bf16.mxu0 %v330
    %362 = vmatpush1.bf16.msra.mxu0 %v329
    %363 = vmatprep.subr.bf16.mxu0 %v327
    %364 = vmatpush1.bf16.msra.mxu0 %v326
    %365 = vmatprep.subr.bf16.mxu0 %v324
    %366 = vmatpush1.bf16.msra.mxu0 %v323
    %367 = vmatprep.subr.bf16.mxu0 %v321
    %368 = vmatpush1.bf16.msra.mxu0 %v320
    %369 = vmatprep.subr.bf16.mxu0 %v318
    %370 = vmatpush1.bf16.msra.mxu0 %v317
    %371 = vmatprep.subr.bf16.mxu0 %v315
    %372 = vmatpush1.bf16.msra.mxu0 %v314
    %373 = vmatprep.subr.bf16.mxu0 %v312
    %374 = vmatpush1.bf16.msra.mxu0 %v311
    %375 = vmatprep.subr.bf16.mxu0 0
    %376 = vmatpush2.bf16.msra.mxu0 0
    %377 = vmatprep.subr.bf16.mxu0 0
    %378 = vmatpush2.bf16.msra.mxu0 0
    %379 = vmatprep.subr.bf16.mxu0 0
    %380 = vmatpush2.bf16.msra.mxu0 0
    %381 = vmatprep.subr.bf16.mxu0 0
    %382 = vmatpush2.bf16.msra.mxu0 0
    %383 = vmatprep.subr.bf16.mxu0 0
    %384 = vmatpush2.bf16.msra.mxu0 0
    %385 = vmatprep.subr.bf16.mxu0 0
    %386 = vmatpush2.bf16.msra.mxu0 0
    %387 = vmatprep.subr.bf16.mxu0 0
    %388 = vmatpush2.bf16.msra.mxu0 0
    %389 = vmatprep.subr.bf16.mxu0 0
    %390 = vmatpush2.bf16.msra.mxu0 0
    %391 = vmatprep.mubr.bf16.mxu0 0
    %392 = vmatmul.mubr.bf16.gmra.mxu0 %v56
    %v393 = vpop.f32.mrf.mxu0
    %v394 = vadd.f32 0.0, %v393
    %v395 = vpop.f32.mrf.mxu0
    %v396 = vadd.f32 0.0, %v395
    %v397 = vpop.f32.mrf.mxu0
    %v398 = vpop.f32.mrf.mxu0
    %399 = vdwg.mxu0
    %400 = vmatprep.subr.bf16.mxu0 0
    %401 = vmatpush1.bf16.msra.mxu0 %v334
    %402 = vmatprep.subr.bf16.mxu0 0
    %403 = vmatpush1.bf16.msra.mxu0 %v331
    %404 = vmatprep.subr.bf16.mxu0 0
    %405 = vmatpush1.bf16.msra.mxu0 %v328
    %406 = vmatprep.subr.bf16.mxu0 0
    %407 = vmatpush1.bf16.msra.mxu0 %v325
    %408 = vmatprep.subr.bf16.mxu0 0
    %409 = vmatpush1.bf16.msra.mxu0 %v322
    %410 = vmatprep.subr.bf16.mxu0 0
    %411 = vmatpush1.bf16.msra.mxu0 %v319
    %412 = vmatprep.subr.bf16.mxu0 0
    %413 = vmatpush1.bf16.msra.mxu0 %v316
    %414 = vmatprep.subr.bf16.mxu0 0
    %415 = vmatpush1.bf16.msra.mxu0 %v313
    %416 = vmatprep.subr.bf16.mxu0 0
    %417 = vmatpush2.bf16.msra.mxu0 0
    %418 = vmatprep.subr.bf16.mxu0 0
    %419 = vmatpush2.bf16.msra.mxu0 0
    %420 = vmatprep.subr.bf16.mxu0 0
    %421 = vmatpush2.bf16.msra.mxu0 0
    %422 = vmatprep.subr.bf16.mxu0 0
    %423 = vmatpush2.bf16.msra.mxu0 0
    %424 = vmatprep.subr.bf16.mxu0 0
    %425 = vmatpush2.bf16.msra.mxu0 0
    %426 = vmatprep.subr.bf16.mxu0 0
    %427 = vmatpush2.bf16.msra.mxu0 0
    %428 = vmatprep.subr.bf16.mxu0 0
    %429 = vmatpush2.bf16.msra.mxu0 0
    %430 = vmatprep.subr.bf16.mxu0 0
    %431 = vmatpush2.bf16.msra.mxu0 0
    %432 = vmatprep.mubr.bf16.mxu0 0
    %433 = vmatmul.mubr.bf16.gmra.mxu0 %v56
    %v434 = vpop.f32.mrf.mxu0
    %v435 = vadd.f32 0.0, %v434
    %v436 = vpop.f32.mrf.mxu0
    %v437 = vpop.f32.mrf.mxu0
    %v438 = vpop.f32.mrf.mxu0
    %439 = vdwg.mxu0
    %v440 = vadd.f32 %v153, %v394
    %v441 = vxor.u32 %v440, 2147483648
    %v442 = vmul.f32 %v441, 1.442695
    %v443 = vpow.pop %v442
    %v444 = vadd.f32 %v443, 1.0
    %v445 = vrcp.pop %v444
    %v446 = vmul.f32 1.0, %v445
    %v447 = vadd.f32 %v155, %v396
    %v448 = vxor.u32 %v447, 2147483648
    %v449 = vmul.f32 %v448, 1.442695
    %v450 = vpow.pop %v449
    %v451 = vadd.f32 %v450, 1.0
    %v452 = vrcp.pop %v451
    %v453 = vmul.f32 1.0, %v452
    %v454 = vld [vmem:[%s5] sm:$0x1]
    %v456 = vlaneseq
    %v457 = vshrl.u32 %v456, 7
    %v458 = vsub.s32 0, %v457
    %v459 = vrot.slane %v454, %v458
    %v461 = vadd.f32 %v435, %v459
    %v462 = vmul.f32 %v446, %v461
    %v463 = vadd.f32 %v194, %v462
    %v464 = vtanh.pop %v463
    %v465 = vsub.f32 %v54, %v464
    %v466 = vmul.f32 %v453, %v465
    %v467 = vadd.f32 %v464, %v466
    %468 = vst [vmem:[#allocation7] sm:$0xff] %v467
    // Predicated region
    $region34: #{memory_updater_forward.1} parent=1 // pred_check
      _
    $region35: #{memory_updater_forward.1} parent=1 // pred_check_branch
      %470 = sbr.rel (0) target = $region37
    $region36: #{memory_updater_forward.1} parent=1 // pred_region
      %s472 = ssub.s32 128, 128
      %473 = vsyncadd [#allocation4], %s472
      %s475 = sshll.u32 [#allocation7], 4
      %s476 = int_to_ptr.vmem [resolvable:$true] %s475
      %478 = dma.vmem_to_hbm [thread:$0]  %s476, 128, %s6, [#allocation4]
    $region37: #{memory_updater_forward.1} parent=1 // pred_fallthru
      _
    // Predicated region
    $region38: #{memory_updater_forward.1} parent=1 // pred_check
      _
    $region39: #{memory_updater_forward.1} parent=1 // pred_check_branch
      %480 = sbr.rel (0) target = $region41
    $region40: #{memory_updater_forward.1} parent=1 // pred_region
      %481 = dma.done [#allocation4], 128
    $region41: #{memory_updater_forward.1} parent=1 // pred_fallthru
      _
    %482 = vsyncpa [#allocation3], 1
    %483 = vsyncpa [#allocation6], 1
    %484 = vsyncpa [#allocation4], 1

</llo_original>
